<compile_context>
chip_gen: v7x
topology: tpu7x:2x2x1
jax: 0.10.0
libtpu: 0.0.40
codegen_flags: <defaults>
</compile_context>

<pallas_src>
import functools

import jax
import jax.numpy as jnp
from jax.experimental import pallas as pl
from jax.experimental.pallas import tpu as pltpu


def _round_up(x, m):
    return ((x + m - 1) // m) * m


def dqn_kernel(x_ref, w1_ref, b1_ref, w2_ref, b2_ref, w3_ref, b3_ref, o_ref):
    # Full forward pass for one batch tile; MXU matmuls accumulate in f32,
    # biases + ReLU applied in f32, activations cast back to the operand
    # dtype (f32 or bf16) before the next matmul.
    cdt = x_ref.dtype
    x = x_ref[...]
    h1 = jnp.dot(x, w1_ref[...], preferred_element_type=jnp.float32) + b1_ref[...]
    h1 = jnp.maximum(h1, 0.0).astype(cdt)                      # relu(fc1) -> (tile, 128)
    h2 = jnp.dot(h1, w2_ref[...], preferred_element_type=jnp.float32) + b2_ref[...]
    h2 = jnp.maximum(h2, 0.0).astype(cdt)                      # relu(fc2) -> (tile, 128) padded
    out = jnp.dot(h2, w3_ref[...], preferred_element_type=jnp.float32) + b3_ref[...]
    o_ref[...] = out.astype(o_ref.dtype)                       # fc3 -> (tile, n_pad), no activation


@functools.partial(jax.jit, static_argnames=("batch_tile", "use_bf16"))
def dqn_forward(x, params, *, batch_tile=512, use_bf16=False):
    """x: (B, input_dim) float32. params: dict of w1,b1,w2,b2,w3,b3 (f32).

    Returns (B, output_dim) float32, matching
      relu(x@w1+b1) -> relu(@w2+b2) -> @w3+b3.
    """
    B, in_dim = x.shape
    w1, b1 = params["w1"], params["b1"]   # (in_dim, 128), (1, 128)
    w2, b2 = params["w2"], params["b2"]   # (128, 64),     (1, 64)
    w3, b3 = params["w3"], params["b3"]   # (64, out_dim), (1, out_dim)
    hid2 = w2.shape[1]
    out_dim = w3.shape[1]

    compute_dtype = jnp.bfloat16 if use_bf16 else jnp.float32
    sublane = 16 if use_bf16 else 8

    # --- batch tile: multiple of the sublane count, no larger than padded B ---
    tile = min(int(batch_tile), _round_up(B, sublane))
    tile = max(sublane, (tile // sublane) * sublane)
    B_pad = _round_up(B, tile)
    if B_pad != B:
        x = jnp.pad(x, ((0, B_pad - B), (0, 0)))

    # --- pad fc2 output (64 -> 128) so the h2 activation is lane-dense -------
    h2_pad = max(128, _round_up(hid2, 128))
    w2p = jnp.pad(w2, ((0, 0), (0, h2_pad - hid2)))        # zero output columns
    b2p = jnp.pad(b2, ((0, 0), (0, h2_pad - hid2)))        # zero bias lanes
    w3r = jnp.pad(w3, ((0, h2_pad - hid2), (0, 0)))        # zero rows: contribute 0

    # --- pad fc3 output to a full 128-lane store (unmasked vst) --------------
    n_pad = max(128, _round_up(out_dim, 128))
    w3p = jnp.pad(w3r, ((0, 0), (0, n_pad - out_dim)))
    b3p = jnp.pad(b3, ((0, 0), (0, n_pad - out_dim)))

    # --- dtype of MXU operands (biases / accumulation / output stay f32) -----
    xc = x.astype(compute_dtype)
    w1c = w1.astype(compute_dtype)
    w2c = w2p.astype(compute_dtype)
    w3c = w3p.astype(compute_dtype)
    b1c = b1.astype(jnp.float32)
    b2c = b2p.astype(jnp.float32)
    b3c = b3p.astype(jnp.float32)

    full = lambda shape: pl.BlockSpec(shape, lambda i: (0, 0))
    out_padded = pl.pallas_call(
        dqn_kernel,
        out_shape=jax.ShapeDtypeStruct((B_pad, n_pad), jnp.float32),
        grid_spec=pltpu.PrefetchScalarGridSpec(
            num_scalar_prefetch=0,
            grid=(B_pad // tile,),
            in_specs=[
                pl.BlockSpec((tile, in_dim), lambda i: (i, 0)),   # x tile
                full(w1c.shape), full(b1c.shape),
                full(w2c.shape), full(b2c.shape),
                full(w3c.shape), full(b3c.shape),
            ],
            out_specs=pl.BlockSpec((tile, n_pad), lambda i: (i, 0)),
        ),
        compiler_params=pltpu.CompilerParams(
            dimension_semantics=("parallel",)),   # batch axis shards across TCs (v7x)
    )(xc, w1c, b1c, w2c, b2c, w3c, b3c)

    return out_padded[:B, :out_dim]


def init_dqn_params(key, input_dim, output_dim):
    """Deterministic init mimicking PyTorch Linear default (U[-1/sqrt(fan_in), +])."""
    def linear(key, fan_in, fan_out):
        kw, kb = jax.random.split(key)
        bound = 1.0 / jnp.sqrt(jnp.float32(fan_in))
        # stored as (in, out) so the kernel does x @ W
        w = jax.random.uniform(kw, (fan_in, fan_out), jnp.float32, -bound, bound)
        b = jax.random.uniform(kb, (1, fan_out), jnp.float32, -bound, bound)
        return w, b

    k1, k2, k3 = jax.random.split(key, 3)
    w1, b1 = linear(k1, input_dim, 128)
    w2, b2 = linear(k2, 128, 64)
    w3, b3 = linear(k3, 64, output_dim)
    return {"w1": w1, "b1": b1, "w2": w2, "b2": b2, "w3": w3, "b3": b3}


def dqn_reference(x, p):
    h1 = jax.nn.relu(x @ p["w1"] + p["b1"])
    h2 = jax.nn.relu(h1 @ p["w2"] + p["b2"])
    return h2 @ p["w3"] + p["b3"]


if __name__ == "__main__":
    key = jax.random.PRNGKey(0)
    kx, kx2, kp = jax.random.split(key, 3)

    input_dim, output_dim = 32, 4
    params = init_dqn_params(kp, input_dim, output_dim)

    # Small batch (single grid step, tile shrunk to a multiple of 8).
    batch = 8
    x = jax.random.normal(kx, (batch, input_dim), jnp.float32)
    out = jax.block_until_ready(dqn_forward(x, params))
    ref = dqn_reference(x, params)
    assert out.shape == (batch, output_dim)
    assert jnp.allclose(out, ref, atol=1e-5, rtol=1e-5), "f32 mismatch vs reference"

    # Larger batch exercising multi-step grid + batch padding (1000 -> 2x512 tiles).
    batch2 = 1000
    x2 = jax.random.normal(kx2, (batch2, input_dim), jnp.float32)
    out2 = jax.block_until_ready(dqn_forward(x2, params, batch_tile=512))
    ref2 = dqn_reference(x2, params)
    assert out2.shape == (batch2, output_dim)
    assert jnp.allclose(out2, ref2, atol=1e-5, rtol=1e-5), "tiled f32 mismatch"

    # Optional bf16 operand path (f32 accumulation); looser tolerance vs f32 ref.
    out_bf16 = jax.block_until_ready(dqn_forward(x2, params, batch_tile=512, use_bf16=True))
    assert jnp.allclose(out_bf16, ref2, atol=3e-2, rtol=3e-2), "bf16 mismatch"

    print("KERNEL_OK")
</pallas_src>

<mosaic_0001>
module attributes {stable_mosaic.version = 11 : i64} {
  func.func @dqn_kernel(%arg0: i32, %arg1: memref<8x32xf32, #tpu.memory_space<vmem>>, %arg2: memref<32x128xf32, #tpu.memory_space<vmem>>, %arg3: memref<1x128xf32, #tpu.memory_space<vmem>>, %arg4: memref<128x128xf32, #tpu.memory_space<vmem>>, %arg5: memref<1x128xf32, #tpu.memory_space<vmem>>, %arg6: memref<128x128xf32, #tpu.memory_space<vmem>>, %arg7: memref<1x128xf32, #tpu.memory_space<vmem>>, %arg8: memref<8x128xf32, #tpu.memory_space<vmem>>) attributes {dimension_semantics = [#tpu.dimension_semantics<parallel>], iteration_bounds = array<i64: 1>, scalar_prefetch = 0 : i64, scratch_operands = 0 : i64, tpu.core_type = #tpu.core_type<tc>, window_params = [{transform_indices = @transform_0, window_bounds = array<i64: 8, 32>}, {pipeline_mode = #tpu.pipeline_mode<synchronous>, transform_indices = @transform_1, window_bounds = array<i64: 32, 128>}, {pipeline_mode = #tpu.pipeline_mode<synchronous>, transform_indices = @transform_2, window_bounds = array<i64: 1, 128>}, {pipeline_mode = #tpu.pipeline_mode<synchronous>, transform_indices = @transform_3, window_bounds = array<i64: 128, 128>}, {pipeline_mode = #tpu.pipeline_mode<synchronous>, transform_indices = @transform_4, window_bounds = array<i64: 1, 128>}, {pipeline_mode = #tpu.pipeline_mode<synchronous>, transform_indices = @transform_5, window_bounds = array<i64: 128, 128>}, {pipeline_mode = #tpu.pipeline_mode<synchronous>, transform_indices = @transform_6, window_bounds = array<i64: 1, 128>}, {transform_indices = @transform_7, window_bounds = array<i64: 8, 128>}]} {
    %c0 = arith.constant 0 : index
    %c0_0 = arith.constant 0 : index
    %0 = vector.load %arg1[%c0, %c0_0] : memref<8x32xf32, #tpu.memory_space<vmem>>, vector<8x32xf32>
    %c0_1 = arith.constant 0 : index
    %c0_2 = arith.constant 0 : index
    %1 = vector.load %arg2[%c0_1, %c0_2] : memref<32x128xf32, #tpu.memory_space<vmem>>, vector<32x128xf32>
    %cst = arith.constant dense<0.000000e+00> : vector<8x128xf32>
    %2 = tpu.matmul %0, %1, %cst {dimension_numbers = #tpu.dot_dimension_numbers<[1], [0], [0], [1], [0, 0, 1, 1], [], []>} : vector<8x32xf32>, vector<32x128xf32>, vector<8x128xf32> -> vector<8x128xf32>
    %c0_3 = arith.constant 0 : index
    %c0_4 = arith.constant 0 : index
    %3 = vector.load %arg3[%c0_3, %c0_4] : memref<1x128xf32, #tpu.memory_space<vmem>>, vector<1x128xf32>
    %4 = vector.broadcast %3 : vector<1x128xf32> to vector<8x128xf32>
    %5 = arith.addf %2, %4 : vector<8x128xf32>
    %cst_5 = arith.constant 0.000000e+00 : f32
    %6 = vector.broadcast %cst_5 : f32 to vector<8x128xf32>
    %7 = arith.maximumf %5, %6 : vector<8x128xf32>
    %c0_6 = arith.constant 0 : index
    %c0_7 = arith.constant 0 : index
    %8 = vector.load %arg4[%c0_6, %c0_7] : memref<128x128xf32, #tpu.memory_space<vmem>>, vector<128x128xf32>
    %cst_8 = arith.constant dense<0.000000e+00> : vector<8x128xf32>
    %9 = tpu.matmul %7, %8, %cst_8 {dimension_numbers = #tpu.dot_dimension_numbers<[1], [0], [0], [1], [0, 0, 1, 1], [], []>} : vector<8x128xf32>, vector<128x128xf32>, vector<8x128xf32> -> vector<8x128xf32>
    %c0_9 = arith.constant 0 : index
    %c0_10 = arith.constant 0 : index
    %10 = vector.load %arg5[%c0_9, %c0_10] : memref<1x128xf32, #tpu.memory_space<vmem>>, vector<1x128xf32>
    %11 = vector.broadcast %10 : vector<1x128xf32> to vector<8x128xf32>
    %12 = arith.addf %9, %11 : vector<8x128xf32>
    %cst_11 = arith.constant 0.000000e+00 : f32
    %13 = vector.broadcast %cst_11 : f32 to vector<8x128xf32>
    %14 = arith.maximumf %12, %13 : vector<8x128xf32>
    %c0_12 = arith.constant 0 : index
    %c0_13 = arith.constant 0 : index
    %15 = vector.load %arg6[%c0_12, %c0_13] : memref<128x128xf32, #tpu.memory_space<vmem>>, vector<128x128xf32>
    %cst_14 = arith.constant dense<0.000000e+00> : vector<8x128xf32>
    %16 = tpu.matmul %14, %15, %cst_14 {dimension_numbers = #tpu.dot_dimension_numbers<[1], [0], [0], [1], [0, 0, 1, 1], [], []>} : vector<8x128xf32>, vector<128x128xf32>, vector<8x128xf32> -> vector<8x128xf32>
    %c0_15 = arith.constant 0 : index
    %c0_16 = arith.constant 0 : index
    %17 = vector.load %arg7[%c0_15, %c0_16] : memref<1x128xf32, #tpu.memory_space<vmem>>, vector<1x128xf32>
    %18 = vector.broadcast %17 : vector<1x128xf32> to vector<8x128xf32>
    %19 = arith.addf %16, %18 : vector<8x128xf32>
    %c0_17 = arith.constant 0 : index
    %c0_18 = arith.constant 0 : index
    %20 = vector.load %arg8[%c0_17, %c0_18] : memref<8x128xf32, #tpu.memory_space<vmem>>, vector<8x128xf32>
    tpu.vector_store %arg8[%c0_17, %c0_18], %19 {strides = array<i32>} : memref<8x128xf32, #tpu.memory_space<vmem>>, vector<8x128xf32>,
    return
  }
  func.func @transform_0(%arg0: i32) -> (i32, i32) {
    %c0_i32 = arith.constant 0 : i32
    %c0_i32_0 = arith.constant 0 : i32
    return %arg0, %c0_i32 : i32, i32
  }
  func.func @transform_1(%arg0: i32) -> (i32, i32) {
    %c0_i32 = arith.constant 0 : i32
    %c0_i32_0 = arith.constant 0 : i32
    %c0_i32_1 = arith.constant 0 : i32
    return %c0_i32, %c0_i32_0 : i32, i32
  }
  func.func @transform_2(%arg0: i32) -> (i32, i32) {
    %c0_i32 = arith.constant 0 : i32
    %c0_i32_0 = arith.constant 0 : i32
    %c0_i32_1 = arith.constant 0 : i32
    return %c0_i32, %c0_i32_0 : i32, i32
  }
  func.func @transform_3(%arg0: i32) -> (i32, i32) {
    %c0_i32 = arith.constant 0 : i32
    %c0_i32_0 = arith.constant 0 : i32
    %c0_i32_1 = arith.constant 0 : i32
    return %c0_i32, %c0_i32_0 : i32, i32
  }
  func.func @transform_4(%arg0: i32) -> (i32, i32) {
    %c0_i32 = arith.constant 0 : i32
    %c0_i32_0 = arith.constant 0 : i32
    %c0_i32_1 = arith.constant 0 : i32
    return %c0_i32, %c0_i32_0 : i32, i32
  }
  func.func @transform_5(%arg0: i32) -> (i32, i32) {
    %c0_i32 = arith.constant 0 : i32
    %c0_i32_0 = arith.constant 0 : i32
    %c0_i32_1 = arith.constant 0 : i32
    return %c0_i32, %c0_i32_0 : i32, i32
  }
  func.func @transform_6(%arg0: i32) -> (i32, i32) {
    %c0_i32 = arith.constant 0 : i32
    %c0_i32_0 = arith.constant 0 : i32
    %c0_i32_1 = arith.constant 0 : i32
    return %c0_i32, %c0_i32_0 : i32, i32
  }
  func.func @transform_7(%arg0: i32) -> (i32, i32) {
    %c0_i32 = arith.constant 0 : i32
    %c0_i32_0 = arith.constant 0 : i32
    return %arg0, %c0_i32 : i32, i32
  }
}

</mosaic_0001>

<llo_original>
// kernel: dqn_forward.1
$region0: #{dqn_forward.1}
  #allocation0 [shape = 'u32[]', space=smem, size = 0x4, offset = 0x4, fixed_abs, tag = 'smem constant byte address 0x4 - core index']
  #allocation1 [shape = 'u32[144,128]{1,0:T(1,128)}', space=vmem, size = 0x12000, scoped, tag = 'internal scratch']
  %s0 = inlined_call_operand.vmem [shape: f32[8,32], index: 0, kind: input, shape index: {}]
  %s1 = inlined_call_operand.vmem [shape: f32[32,128], index: 1, kind: input, shape index: {}]
  %s2 = inlined_call_operand.vmem [shape: f32[1,128], index: 2, kind: input, shape index: {}]
  %s3 = inlined_call_operand.vmem [shape: f32[128,128], index: 3, kind: input, shape index: {}]
  %s4 = inlined_call_operand.vmem [shape: f32[1,128], index: 4, kind: input, shape index: {}]
  %s5 = inlined_call_operand.vmem [shape: f32[128,128], index: 5, kind: input, shape index: {}]
  %s6 = inlined_call_operand.vmem [shape: f32[1,128], index: 6, kind: input, shape index: {}]
  %s7 = inlined_call_operand.vmem [shape: f32[8,128], index: 7, kind: output, shape index: {}]
  %s8 = sld [smem:[#allocation0]]
  $region38: #{dqn_forward.1} parent=0
    _
  %s10 = ssub.s32 1, %s8
  %s11 = scalar_select 0, %s10, %s8
  // Predicated region
  $region2: #{dqn_forward.1} parent=0 // pred_check
    _
  $region3: #{dqn_forward.1} parent=0 // pred_check_branch
    %13 = sbr.rel (0) target = $region5
  $region4: #{dqn_forward.1} parent=0 // pred_region
    _
  $region5: #{dqn_forward.1} parent=0 // pred_fallthru
    _
  // Predicated region
  $region6: #{dqn_forward.1} parent=0 // pred_check
    _
  $region7: #{dqn_forward.1} parent=0 // pred_check_branch
    %15 = sbr.rel (0) target = $region9
  $region8: #{dqn_forward.1} parent=0 // pred_region
    _
  $region9: #{dqn_forward.1} parent=0 // pred_fallthru
    _
  // Predicated region
  $region10: #{dqn_forward.1} parent=0 // pred_check
    _
  $region11: #{dqn_forward.1} parent=0 // pred_check_branch
    %17 = sbr.rel (0) target = $region13
  $region12: #{dqn_forward.1} parent=0 // pred_region
    _
  $region13: #{dqn_forward.1} parent=0 // pred_fallthru
    _
  // Predicated region
  $region14: #{dqn_forward.1} parent=0 // pred_check
    _
  $region15: #{dqn_forward.1} parent=0 // pred_check_branch
    %19 = sbr.rel (0) target = $region17
  $region16: #{dqn_forward.1} parent=0 // pred_region
    _
  $region17: #{dqn_forward.1} parent=0 // pred_fallthru
    _
  // Predicated region
  $region18: #{dqn_forward.1} parent=0 // pred_check
    _
  $region19: #{dqn_forward.1} parent=0 // pred_check_branch
    %21 = sbr.rel (0) target = $region21
  $region20: #{dqn_forward.1} parent=0 // pred_region
    _
  $region21: #{dqn_forward.1} parent=0 // pred_fallthru
    _
  // Predicated region
  $region22: #{dqn_forward.1} parent=0 // pred_check
    _
  $region23: #{dqn_forward.1} parent=0 // pred_check_branch
    %23 = sbr.rel (0) target = $region25
  $region24: #{dqn_forward.1} parent=0 // pred_region
    _
  $region25: #{dqn_forward.1} parent=0 // pred_fallthru
    _
  // Predicated region
  $region26: #{dqn_forward.1} parent=0 // pred_check
    _
  $region27: #{dqn_forward.1} parent=0 // pred_check_branch
    %25 = sbr.rel (0) target = $region29
  $region28: #{dqn_forward.1} parent=0 // pred_region
    _
  $region29: #{dqn_forward.1} parent=0 // pred_fallthru
    _
  %v26 = vld [vmem:[%s0] sm:$0xff]
  %v27 = vld [vmem:[%s1] sm:$0xff]
  %v28 = vld [vmem:[%s1 + $0x8] sm:$0xff]
  %v29 = vld [vmem:[%s1 + $0x10] sm:$0xff]
  %v30 = vld [vmem:[%s1 + $0x18] sm:$0xff]
  %v31 = vld [vmem:[%s2] sm:$0x1]
  %v33 = vlaneseq
  %v34 = vshrl.u32 %v33, 7
  %v35 = vsub.s32 0, %v34
  %v36 = vrot.slane %v31, %v35
  %vm38 = vcmask 261120
  %v40 = vsel %vm38, %v26, 0
  %42 = vmatprep.subr.mxu0 0.0
  %43 = vmatpush1.msra.mxu0 %v27
  %44 = vmatprep.subr.mxu0 0.0
  %45 = vmatpush1.msra.mxu0 %v28
  %46 = vmatprep.subr.mxu0 0.0
  %47 = vmatpush1.msra.mxu0 %v29
  %48 = vmatprep.subr.mxu0 0.0
  %49 = vmatpush1.msra.mxu0 %v30
  %50 = vmatprep.subr.mxu0 0.0
  %51 = vmatpush1.msra.mxu0 0.0
  %52 = vmatprep.subr.mxu0 0.0
  %53 = vmatpush1.msra.mxu0 0.0
  %54 = vmatprep.subr.mxu0 0.0
  %55 = vmatpush1.msra.mxu0 0.0
  %56 = vmatprep.subr.mxu0 0.0
  %57 = vmatpush1.msra.mxu0 0.0
  %58 = vmatprep.subr.mxu0 0.0
  %59 = vmatpush1.msra.mxu0 0.0
  %60 = vmatprep.subr.mxu0 0.0
  %61 = vmatpush1.msra.mxu0 0.0
  %62 = vmatprep.subr.mxu0 0.0
  %63 = vmatpush1.msra.mxu0 0.0
  %64 = vmatprep.subr.mxu0 0.0
  %65 = vmatpush1.msra.mxu0 0.0
  %66 = vmatprep.subr.mxu0 0.0
  %67 = vmatpush1.msra.mxu0 0.0
  %68 = vmatprep.subr.mxu0 0.0
  %69 = vmatpush1.msra.mxu0 0.0
  %70 = vmatprep.subr.mxu0 0.0
  %71 = vmatpush1.msra.mxu0 0.0
  %72 = vmatprep.subr.mxu0 0.0
  %73 = vmatpush1.msra.mxu0 0.0
  %74 = vmatprep.subr.mxu0 0.0
  %75 = vmatpush1.msra.mxu0 0.0
  %76 = vmatprep.subr.mxu0 0.0
  %77 = vmatpush1.msra.mxu0 0.0
  %78 = vmatprep.subr.mxu0 0.0
  %79 = vmatpush1.msra.mxu0 0.0
  %80 = vmatprep.subr.mxu0 0.0
  %81 = vmatpush1.msra.mxu0 0.0
  %82 = vmatprep.subr.mxu0 0.0
  %83 = vmatpush1.msra.mxu0 0.0
  %84 = vmatprep.subr.mxu0 0.0
  %85 = vmatpush1.msra.mxu0 0.0
  %86 = vmatprep.subr.mxu0 0.0
  %87 = vmatpush1.msra.mxu0 0.0
  %88 = vmatprep.subr.mxu0 0.0
  %89 = vmatpush1.msra.mxu0 0.0
  %90 = vmatprep.subr.mxu0 0.0
  %91 = vmatpush1.msra.mxu0 0.0
  %92 = vmatprep.subr.mxu0 0.0
  %93 = vmatpush1.msra.mxu0 0.0
  %94 = vmatprep.subr.mxu0 0.0
  %95 = vmatpush1.msra.mxu0 0.0
  %96 = vmatprep.subr.mxu0 0.0
  %97 = vmatpush1.msra.mxu0 0.0
  %98 = vmatprep.subr.mxu0 0.0
  %99 = vmatpush1.msra.mxu0 0.0
  %100 = vmatprep.subr.mxu0 0.0
  %101 = vmatpush1.msra.mxu0 0.0
  %102 = vmatprep.subr.mxu0 0.0
  %103 = vmatpush1.msra.mxu0 0.0
  %104 = vmatprep.subr.mxu0 0.0
  %105 = vmatpush1.msra.mxu0 0.0
  %106 = vmatprep.mubr.f32.mxu0 0.0
  %107 = vmatmul.mubr.f32.gmra.mrb[0].mxu0 %v40
  %v108 = vpop.f32.mrb[0].mxu0
  %v109 = vadd.f32 %v36, %v108
  %v110 = vpop.f32.mrb[0].mxu0
  %111 = vdwg.mxu0
  %v112 = vmax.f32 %v109, 0.0
  %v113 = vld [vmem:[%s3] sm:$0xff]
  %v114 = vld [vmem:[%s3 + $0x8] sm:$0xff]
  %v115 = vld [vmem:[%s3 + $0x10] sm:$0xff]
  %v116 = vld [vmem:[%s3 + $0x18] sm:$0xff]
  %v117 = vld [vmem:[%s3 + $0x20] sm:$0xff]
  %v118 = vld [vmem:[%s3 + $0x28] sm:$0xff]
  %v119 = vld [vmem:[%s3 + $0x30] sm:$0xff]
  %v120 = vld [vmem:[%s3 + $0x38] sm:$0xff]
  %v121 = vld [vmem:[%s3 + $0x40] sm:$0xff]
  %v122 = vld [vmem:[%s3 + $0x48] sm:$0xff]
  %v123 = vld [vmem:[%s3 + $0x50] sm:$0xff]
  %v124 = vld [vmem:[%s3 + $0x58] sm:$0xff]
  %v125 = vld [vmem:[%s3 + $0x60] sm:$0xff]
  %v126 = vld [vmem:[%s3 + $0x68] sm:$0xff]
  %v127 = vld [vmem:[%s3 + $0x70] sm:$0xff]
  %v128 = vld [vmem:[%s3 + $0x78] sm:$0xff]
  %v129 = vld [vmem:[%s4] sm:$0x1]
  %v131 = vlaneseq
  %v132 = vshrl.u32 %v131, 7
  %v133 = vsub.s32 0, %v132
  %v134 = vrot.slane %v129, %v133
  %136 = vmatprep.subr.mxu0 0.0
  %137 = vmatpush1.msra.mxu0 %v113
  %138 = vmatprep.subr.mxu0 0.0
  %139 = vmatpush1.msra.mxu0 %v114
  %140 = vmatprep.subr.mxu0 0.0
  %141 = vmatpush1.msra.mxu0 %v115
  %142 = vmatprep.subr.mxu0 0.0
  %143 = vmatpush1.msra.mxu0 %v116
  %144 = vmatprep.subr.mxu0 0.0
  %145 = vmatpush1.msra.mxu0 %v117
  %146 = vmatprep.subr.mxu0 0.0
  %147 = vmatpush1.msra.mxu0 %v118
  %148 = vmatprep.subr.mxu0 0.0
  %149 = vmatpush1.msra.mxu0 %v119
  %150 = vmatprep.subr.mxu0 0.0
  %151 = vmatpush1.msra.mxu0 %v120
  %152 = vmatprep.subr.mxu0 0.0
  %153 = vmatpush1.msra.mxu0 %v121
  %154 = vmatprep.subr.mxu0 0.0
  %155 = vmatpush1.msra.mxu0 %v122
  %156 = vmatprep.subr.mxu0 0.0
  %157 = vmatpush1.msra.mxu0 %v123
  %158 = vmatprep.subr.mxu0 0.0
  %159 = vmatpush1.msra.mxu0 %v124
  %160 = vmatprep.subr.mxu0 0.0
  %161 = vmatpush1.msra.mxu0 %v125
  %162 = vmatprep.subr.mxu0 0.0
  %163 = vmatpush1.msra.mxu0 %v126
  %164 = vmatprep.subr.mxu0 0.0
  %165 = vmatpush1.msra.mxu0 %v127
  %166 = vmatprep.subr.mxu0 0.0
  %167 = vmatpush1.msra.mxu0 %v128
  %168 = vmatprep.subr.mxu0 0.0
  %169 = vmatpush1.msra.mxu0 0.0
  %170 = vmatprep.subr.mxu0 0.0
  %171 = vmatpush1.msra.mxu0 0.0
  %172 = vmatprep.subr.mxu0 0.0
  %173 = vmatpush1.msra.mxu0 0.0
  %174 = vmatprep.subr.mxu0 0.0
  %175 = vmatpush1.msra.mxu0 0.0
  %176 = vmatprep.subr.mxu0 0.0
  %177 = vmatpush1.msra.mxu0 0.0
  %178 = vmatprep.subr.mxu0 0.0
  %179 = vmatpush1.msra.mxu0 0.0
  %180 = vmatprep.subr.mxu0 0.0
  %181 = vmatpush1.msra.mxu0 0.0
  %182 = vmatprep.subr.mxu0 0.0
  %183 = vmatpush1.msra.mxu0 0.0
  %184 = vmatprep.subr.mxu0 0.0
  %185 = vmatpush1.msra.mxu0 0.0
  %186 = vmatprep.subr.mxu0 0.0
  %187 = vmatpush1.msra.mxu0 0.0
  %188 = vmatprep.subr.mxu0 0.0
  %189 = vmatpush1.msra.mxu0 0.0
  %190 = vmatprep.subr.mxu0 0.0
  %191 = vmatpush1.msra.mxu0 0.0
  %192 = vmatprep.subr.mxu0 0.0
  %193 = vmatpush1.msra.mxu0 0.0
  %194 = vmatprep.subr.mxu0 0.0
  %195 = vmatpush1.msra.mxu0 0.0
  %196 = vmatprep.subr.mxu0 0.0
  %197 = vmatpush1.msra.mxu0 0.0
  %198 = vmatprep.subr.mxu0 0.0
  %199 = vmatpush1.msra.mxu0 0.0
  %200 = vmatprep.mubr.f32.mxu0 0.0
  %201 = vmatmul.mubr.f32.gmra.mrb[0].mxu0 %v112
  %v202 = vpop.f32.mrb[0].mxu0
  %v203 = vadd.f32 %v134, %v202
  %v204 = vpop.f32.mrb[0].mxu0
  %205 = vdwg.mxu0
  %v206 = vmax.f32 %v203, 0.0
  %v207 = vld [vmem:[%s5] sm:$0xff]
  %v208 = vld [vmem:[%s5 + $0x8] sm:$0xff]
  %v209 = vld [vmem:[%s5 + $0x10] sm:$0xff]
  %v210 = vld [vmem:[%s5 + $0x18] sm:$0xff]
  %v211 = vld [vmem:[%s5 + $0x20] sm:$0xff]
  %v212 = vld [vmem:[%s5 + $0x28] sm:$0xff]
  %v213 = vld [vmem:[%s5 + $0x30] sm:$0xff]
  %v214 = vld [vmem:[%s5 + $0x38] sm:$0xff]
  %v215 = vld [vmem:[%s5 + $0x40] sm:$0xff]
  %v216 = vld [vmem:[%s5 + $0x48] sm:$0xff]
  %v217 = vld [vmem:[%s5 + $0x50] sm:$0xff]
  %v218 = vld [vmem:[%s5 + $0x58] sm:$0xff]
  %v219 = vld [vmem:[%s5 + $0x60] sm:$0xff]
  %v220 = vld [vmem:[%s5 + $0x68] sm:$0xff]
  %v221 = vld [vmem:[%s5 + $0x70] sm:$0xff]
  %v222 = vld [vmem:[%s5 + $0x78] sm:$0xff]
  %v223 = vld [vmem:[%s6] sm:$0x1]
  %v225 = vlaneseq
  %v226 = vshrl.u32 %v225, 7
  %v227 = vsub.s32 0, %v226
  %v228 = vrot.slane %v223, %v227
  %230 = vmatprep.subr.mxu0 0.0
  %231 = vmatpush1.msra.mxu0 %v207
  %232 = vmatprep.subr.mxu0 0.0
  %233 = vmatpush1.msra.mxu0 %v208
  %234 = vmatprep.subr.mxu0 0.0
  %235 = vmatpush1.msra.mxu0 %v209
  %236 = vmatprep.subr.mxu0 0.0
  %237 = vmatpush1.msra.mxu0 %v210
  %238 = vmatprep.subr.mxu0 0.0
  %239 = vmatpush1.msra.mxu0 %v211
  %240 = vmatprep.subr.mxu0 0.0
  %241 = vmatpush1.msra.mxu0 %v212
  %242 = vmatprep.subr.mxu0 0.0
  %243 = vmatpush1.msra.mxu0 %v213
  %244 = vmatprep.subr.mxu0 0.0
  %245 = vmatpush1.msra.mxu0 %v214
  %246 = vmatprep.subr.mxu0 0.0
  %247 = vmatpush1.msra.mxu0 %v215
  %248 = vmatprep.subr.mxu0 0.0
  %249 = vmatpush1.msra.mxu0 %v216
  %250 = vmatprep.subr.mxu0 0.0
  %251 = vmatpush1.msra.mxu0 %v217
  %252 = vmatprep.subr.mxu0 0.0
  %253 = vmatpush1.msra.mxu0 %v218
  %254 = vmatprep.subr.mxu0 0.0
  %255 = vmatpush1.msra.mxu0 %v219
  %256 = vmatprep.subr.mxu0 0.0
  %257 = vmatpush1.msra.mxu0 %v220
  %258 = vmatprep.subr.mxu0 0.0
  %259 = vmatpush1.msra.mxu0 %v221
  %260 = vmatprep.subr.mxu0 0.0
  %261 = vmatpush1.msra.mxu0 %v222
  %262 = vmatprep.subr.mxu0 0.0
  %263 = vmatpush1.msra.mxu0 0.0
  %264 = vmatprep.subr.mxu0 0.0
  %265 = vmatpush1.msra.mxu0 0.0
  %266 = vmatprep.subr.mxu0 0.0
  %267 = vmatpush1.msra.mxu0 0.0
  %268 = vmatprep.subr.mxu0 0.0
  %269 = vmatpush1.msra.mxu0 0.0
  %270 = vmatprep.subr.mxu0 0.0
  %271 = vmatpush1.msra.mxu0 0.0
  %272 = vmatprep.subr.mxu0 0.0
  %273 = vmatpush1.msra.mxu0 0.0
  %274 = vmatprep.subr.mxu0 0.0
  %275 = vmatpush1.msra.mxu0 0.0
  %276 = vmatprep.subr.mxu0 0.0
  %277 = vmatpush1.msra.mxu0 0.0
  %278 = vmatprep.subr.mxu0 0.0
  %279 = vmatpush1.msra.mxu0 0.0
  %280 = vmatprep.subr.mxu0 0.0
  %281 = vmatpush1.msra.mxu0 0.0
  %282 = vmatprep.subr.mxu0 0.0
  %283 = vmatpush1.msra.mxu0 0.0
  %284 = vmatprep.subr.mxu0 0.0
  %285 = vmatpush1.msra.mxu0 0.0
  %286 = vmatprep.subr.mxu0 0.0
  %287 = vmatpush1.msra.mxu0 0.0
  %288 = vmatprep.subr.mxu0 0.0
  %289 = vmatpush1.msra.mxu0 0.0
  %290 = vmatprep.subr.mxu0 0.0
  %291 = vmatpush1.msra.mxu0 0.0
  %292 = vmatprep.subr.mxu0 0.0
  %293 = vmatpush1.msra.mxu0 0.0
  %294 = vmatprep.mubr.f32.mxu0 0.0
  %295 = vmatmul.mubr.f32.gmra.mrb[0].mxu0 %v206
  %v296 = vpop.f32.mrb[0].mxu0
  %v297 = vadd.f32 %v228, %v296
  %v298 = vpop.f32.mrb[0].mxu0
  %299 = vdwg.mxu0
  %300 = vst [vmem:[%s7] sm:$0xff] %v297
  // Predicated region
  $region30: #{dqn_forward.1} parent=0 // pred_check
    _
  $region31: #{dqn_forward.1} parent=0 // pred_check_branch
    %302 = sbr.rel (0) target = $region33
  $region32: #{dqn_forward.1} parent=0 // pred_region
    _
  $region33: #{dqn_forward.1} parent=0 // pred_fallthru
    _
  // Predicated region
  $region34: #{dqn_forward.1} parent=0 // pred_check
    _
  $region35: #{dqn_forward.1} parent=0 // pred_check_branch
    %304 = sbr.rel (0) target = $region37
  $region36: #{dqn_forward.1} parent=0 // pred_region
    _
  $region37: #{dqn_forward.1} parent=0 // pred_fallthru
    _

</llo_original>
